<compile_context>
chip_gen: v7x
topology: tpu7x:2x2x1
jax: 0.10.0
libtpu: 0.0.40
codegen_flags: <defaults>
</compile_context>

<pallas_src>
import functools

import jax
import jax.numpy as jnp
import numpy as np
from jax.experimental import pallas as pl
from jax.experimental.pallas import tpu as pltpu


# ----------------------------------------------------------------------------
# Pallas kernel: attention-pooling classification head
# ----------------------------------------------------------------------------
def head_kernel(h_ref, wt_ref, bt_ref, wp_ref, bp_ref, att_ref, probs_ref):
    """Batched head over Bt batch rows per grid step.

    h_ref    : (Bt, S, H)  hidden states INCLUDING the CLS token (masked here)
    wt_ref   : (1, H)      token_predictor weight (row-major, H last)
    bt_ref   : (1,)        token_predictor bias (SMEM scalar)
    wp_ref   : (H, L)      predictor weight
    bp_ref   : (1, L)      predictor bias
    att_ref  : (Bt, S)     output token attention, lane-dense (CLS weight == 0)
    probs_ref: (Bt, L)     output class probabilities (softmax over labels)
    """
    h = h_ref[...]                                     # (Bt, S, H) f32
    wt = wt_ref[...]                                   # (1, H)

    # token_logits = Linear(H -> 1)(h), kept lane-dense: tokens on lane axis.
    token_logits = jnp.sum(h * wt, axis=-1) + bt_ref[0]          # (Bt, S)

    # Drop the CLS token (position 0) by forcing its softmax weight to 0;
    # this is equivalent to slicing hidden[:, 1:, :] before the head.
    bt_rows, seq = token_logits.shape
    pos = jax.lax.broadcasted_iota(jnp.int32, (bt_rows, seq), 1)
    token_logits = jnp.where(pos == 0, jnp.float32(-1e30), token_logits)

    # Softmax over tokens (single-vreg lane reductions).
    m = jnp.max(token_logits, axis=-1, keepdims=True)            # (Bt, 1)
    e = jnp.exp(token_logits - m)
    att = e / jnp.sum(e, axis=-1, keepdims=True)                 # (Bt, S)
    att_ref[...] = att                                           # lane-dense store

    # ctx[b, :] = sum_s att[b, s] * h[b, s, :]   (== torch.bmm(h^T, att))
    ctx = jnp.sum(h * att[:, :, None], axis=1)                   # (Bt, H)

    # Class logits + softmax over labels (MXU matmul, f32 accumulate).
    logits = jnp.dot(ctx, wp_ref[...],
                     preferred_element_type=jnp.float32) + bp_ref[...]   # (Bt, L)
    lm = jnp.max(logits, axis=-1, keepdims=True)
    le = jnp.exp(logits - lm)
    probs_ref[...] = le / jnp.sum(le, axis=-1, keepdims=True)


def _pick_batch_tile(B, S, H, L, hidden_budget_bytes=20 * 1024 * 1024):
    """Batch rows per grid step, sized so the double-buffered working set
    stays well under v7x's 64 MiB VMEM (v5e/v6e have 128 MiB)."""
    per_row = 2 * 4 * (S * H + S + L)       # double-buffered f32 in + out per row
    bt = max(1, hidden_budget_bytes // per_row)
    if bt >= B:
        return B
    return max(8, (bt // 8) * 8)            # keep sublane alignment for outputs


def attention_pool_head(hidden, wt, bt, wp, bp):
    """hidden: (B, S, H) float32 (CLS token included).

    Returns (probs (B, L), att_full (B, S)) where att_full[:, 0] == 0.
    """
    B, S, H = hidden.shape
    L = wp.shape[1]
    Bt = _pick_batch_tile(B, S, H, L)

    att_full, probs = pl.pallas_call(
        head_kernel,
        out_shape=(
            jax.ShapeDtypeStruct((B, S), jnp.float32),
            jax.ShapeDtypeStruct((B, L), jnp.float32),
        ),
        grid_spec=pltpu.PrefetchScalarGridSpec(
            num_scalar_prefetch=0,
            grid=(pl.cdiv(B, Bt),),
            in_specs=[
                pl.BlockSpec((Bt, S, H), lambda b: (b, 0, 0)),   # hidden states
                pl.BlockSpec((1, H), lambda b: (0, 0)),          # wt
                pl.BlockSpec(memory_space=pltpu.MemorySpace.SMEM),  # bt scalar
                pl.BlockSpec((H, L), lambda b: (0, 0)),          # wp
                pl.BlockSpec((1, L), lambda b: (0, 0)),          # bp
            ],
            out_specs=[
                pl.BlockSpec((Bt, S), lambda b: (b, 0)),         # token att (lane-dense)
                pl.BlockSpec((Bt, L), lambda b: (b, 0)),         # class probs
            ],
        ),
        compiler_params=pltpu.CompilerParams(
            dimension_semantics=("parallel",),
            vmem_limit_bytes=44 * 1024 * 1024,
        ),
    )(hidden, wt, bt, wp, bp)

    return probs, att_full


# ----------------------------------------------------------------------------
# Synthetic deterministic encoder stand-in (plain JAX glue)
# ----------------------------------------------------------------------------
def make_params(key, vocab, n_types, seq, hidden, num_labels):
    ks = jax.random.split(key, 10)
    s = 0.02
    p = {
        "word_emb": s * jax.random.normal(ks[0], (vocab, hidden), jnp.float32),
        "type_emb": s * jax.random.normal(ks[1], (n_types, hidden), jnp.float32),
        "pos_emb":  s * jax.random.normal(ks[2], (seq, hidden), jnp.float32),
        "wq": s * jax.random.normal(ks[3], (hidden, hidden), jnp.float32),
        "wk": s * jax.random.normal(ks[4], (hidden, hidden), jnp.float32),
        "wv": s * jax.random.normal(ks[5], (hidden, hidden), jnp.float32),
        "w_ffn": s * jax.random.normal(ks[6], (hidden, hidden), jnp.float32),
        # head parameters (the nn.Linear layers of BlackBoxPredictor)
        "wt": s * jax.random.normal(ks[7], (1, hidden), jnp.float32),   # Linear(H,1).weight
        "bt": jnp.zeros((1,), jnp.float32),                             # Linear(H,1).bias
        "wp": s * jax.random.normal(ks[8], (hidden, num_labels), jnp.float32),
        "bp": s * jax.random.normal(ks[9], (1, num_labels), jnp.float32),
    }
    return p


def synthetic_encoder(p, input_ids, token_type_ids, attention_mask):
    """Tiny deterministic single-layer self-attention encoder (stand-in)."""
    x = (p["word_emb"][input_ids]
         + p["type_emb"][token_type_ids]
         + p["pos_emb"][None, :, :])                              # (B, S, H)
    H = x.shape[-1]
    q = x @ p["wq"]
    k = x @ p["wk"]
    v = x @ p["wv"]
    scores = jnp.einsum("bqh,bkh->bqk", q, k) / jnp.sqrt(jnp.float32(H))
    mask = attention_mask[:, None, :] == 0
    scores = jnp.where(mask, -1e9, scores)
    a = jax.nn.softmax(scores, axis=-1)
    x = x + jnp.einsum("bqk,bkh->bqh", a, v)
    x = x + jnp.tanh(x @ p["w_ffn"])
    return x


@jax.jit
def blackbox_predictor_forward(params, input_ids, token_type_ids, attention_mask):
    hidden = synthetic_encoder(params, input_ids, token_type_ids, attention_mask)
    # No hidden[:, 1:, :] slice here: the CLS row is masked inside the kernel.
    probs, att_full = attention_pool_head(
        hidden, params["wt"], params["bt"], params["wp"], params["bp"])
    token_att = att_full[:, 1:, None]        # (B, S-1, 1) — tiny, cheap slice
    return probs, token_att


# ----------------------------------------------------------------------------
# Pure-JAX reference of the head (for a silent sanity check)
# ----------------------------------------------------------------------------
def head_reference(h_no_cls, wt, bt, wp, bp):
    token_logits = jnp.einsum("bsh,oh->bso", h_no_cls, wt) + bt[0]   # (B, Sm1, 1)
    token_att = jax.nn.softmax(token_logits[..., 0], axis=-1)[..., None]
    ctx = jnp.einsum("bsh,bso->bh", h_no_cls, token_att)
    probs = jax.nn.softmax(ctx @ wp + bp, axis=-1)
    return probs, token_att


if __name__ == "__main__":
    key = jax.random.PRNGKey(0)
    B, S, H, L, VOCAB = 2, 8, 32, 4, 100

    kp, k1, k2 = jax.random.split(key, 3)
    params = make_params(kp, VOCAB, 2, S, H, L)

    input_ids = jax.random.randint(k1, (B, S), 0, VOCAB, dtype=jnp.int32)
    token_type_ids = jnp.zeros((B, S), dtype=jnp.int32)
    attention_mask = jnp.ones((B, S), dtype=jnp.int32)

    probs, token_att = blackbox_predictor_forward(
        params, input_ids, token_type_ids, attention_mask)
    jax.block_until_ready((probs, token_att))

    # silent correctness check of the Pallas head against a pure-JAX reference
    hidden = synthetic_encoder(params, input_ids, token_type_ids, attention_mask)
    ref_probs, ref_att = head_reference(
        hidden[:, 1:, :], params["wt"], params["bt"], params["wp"], params["bp"])
    assert np.allclose(np.asarray(probs), np.asarray(ref_probs), atol=1e-5)
    assert np.allclose(np.asarray(token_att), np.asarray(ref_att), atol=1e-5)
    assert probs.shape == (B, L) and token_att.shape == (B, S - 1, 1)

    print("KERNEL_OK")
</pallas_src>

<mosaic_0001>
module attributes {stable_mosaic.version = 11 : i64} {
  func.func @head_kernel(%arg0: i32, %arg1: memref<2x8x32xf32, #tpu.memory_space<vmem>>, %arg2: memref<1x32xf32, #tpu.memory_space<vmem>>, %arg3: memref<1xf32, #tpu.memory_space<smem>>, %arg4: memref<32x4xf32, #tpu.memory_space<vmem>>, %arg5: memref<1x4xf32, #tpu.memory_space<vmem>>, %arg6: memref<2x8xf32, #tpu.memory_space<vmem>>, %arg7: memref<2x4xf32, #tpu.memory_space<vmem>>) attributes {dimension_semantics = [#tpu.dimension_semantics<parallel>], iteration_bounds = array<i64: 1>, scalar_prefetch = 0 : i64, scratch_operands = 0 : i64, tpu.core_type = #tpu.core_type<tc>, window_params = [{transform_indices = @transform_0, window_bounds = array<i64: 2, 8, 32>}, {pipeline_mode = #tpu.pipeline_mode<synchronous>, transform_indices = @transform_1, window_bounds = array<i64: 1, 32>}, {transform_indices = @transform_2, window_bounds = array<i64: 1>}, {pipeline_mode = #tpu.pipeline_mode<synchronous>, transform_indices = @transform_3, window_bounds = array<i64: 32, 4>}, {pipeline_mode = #tpu.pipeline_mode<synchronous>, transform_indices = @transform_4, window_bounds = array<i64: 1, 4>}, {transform_indices = @transform_5, window_bounds = array<i64: 2, 8>}, {transform_indices = @transform_6, window_bounds = array<i64: 2, 4>}]} {
    %c0 = arith.constant 0 : index
    %c0_0 = arith.constant 0 : index
    %c0_1 = arith.constant 0 : index
    %0 = vector.load %arg1[%c0, %c0_0, %c0_1] : memref<2x8x32xf32, #tpu.memory_space<vmem>>, vector<2x8x32xf32>
    %c0_2 = arith.constant 0 : index
    %c0_3 = arith.constant 0 : index
    %1 = vector.load %arg2[%c0_2, %c0_3] : memref<1x32xf32, #tpu.memory_space<vmem>>, vector<1x32xf32>
    %2 = vector.shape_cast %1 : vector<1x32xf32> to vector<1x1x32xf32>
    %3 = vector.broadcast %2 : vector<1x1x32xf32> to vector<2x8x32xf32>
    %4 = arith.mulf %0, %3 : vector<2x8x32xf32>
    %cst = arith.constant dense<0.000000e+00> : vector<2x8xf32>
    %5 = vector.multi_reduction <add>, %4, %cst [2] : vector<2x8x32xf32> to vector<2x8xf32>
    %c0_4 = arith.constant 0 : index
    %6 = memref.load %arg3[%c0_4] : memref<1xf32, #tpu.memory_space<smem>>
    %7 = vector.broadcast %6 : f32 to vector<2x8xf32>
    %8 = arith.addf %5, %7 : vector<2x8xf32>
    %9 = tpu.iota {dimensions = array<i32: 1>} : vector<2x8xi32>
    %c0_i32 = arith.constant 0 : i32
    %10 = vector.broadcast %c0_i32 : i32 to vector<2x8xi32>
    %11 = arith.cmpi eq, %9, %10 : vector<2x8xi32>
    %cst_5 = arith.constant -1.000000e+30 : f32
    %12 = vector.broadcast %cst_5 : f32 to vector<2x8xf32>
    %13 = arith.select %11, %12, %8 : vector<2x8xi1>, vector<2x8xf32>
    %cst_6 = arith.constant dense<0xFF800000> : vector<2xf32>
    %14 = vector.multi_reduction <maximumf>, %13, %cst_6 [1] : vector<2x8xf32> to vector<2xf32>
    %15 = vector.shape_cast %14 : vector<2xf32> to vector<2x1xf32>
    %16 = vector.broadcast %15 : vector<2x1xf32> to vector<2x8xf32>
    %17 = arith.subf %13, %16 : vector<2x8xf32>
    %18 = math.exp %17 : vector<2x8xf32>
    %cst_7 = arith.constant dense<0.000000e+00> : vector<2xf32>
    %19 = vector.multi_reduction <add>, %18, %cst_7 [1] : vector<2x8xf32> to vector<2xf32>
    %20 = vector.shape_cast %19 : vector<2xf32> to vector<2x1xf32>
    %21 = vector.broadcast %20 : vector<2x1xf32> to vector<2x8xf32>
    %22 = arith.divf %18, %21 : vector<2x8xf32>
    %c0_8 = arith.constant 0 : index
    %c0_9 = arith.constant 0 : index
    %23 = vector.load %arg6[%c0_8, %c0_9] : memref<2x8xf32, #tpu.memory_space<vmem>>, vector<2x8xf32>
    tpu.vector_store %arg6[%c0_8, %c0_9], %22 {strides = array<i32>} : memref<2x8xf32, #tpu.memory_space<vmem>>, vector<2x8xf32>,
    %24 = vector.shape_cast %22 : vector<2x8xf32> to vector<2x8x1xf32>
    %25 = vector.broadcast %24 : vector<2x8x1xf32> to vector<2x8x32xf32>
    %26 = arith.mulf %0, %25 : vector<2x8x32xf32>
    %cst_10 = arith.constant dense<0.000000e+00> : vector<2x32xf32>
    %27 = vector.multi_reduction <add>, %26, %cst_10 [1] : vector<2x8x32xf32> to vector<2x32xf32>
    %c0_11 = arith.constant 0 : index
    %c0_12 = arith.constant 0 : index
    %28 = vector.load %arg4[%c0_11, %c0_12] : memref<32x4xf32, #tpu.memory_space<vmem>>, vector<32x4xf32>
    %cst_13 = arith.constant dense<0.000000e+00> : vector<2x4xf32>
    %29 = tpu.matmul %27, %28, %cst_13 {dimension_numbers = #tpu.dot_dimension_numbers<[1], [0], [0], [1], [0, 0, 1, 1], [], []>} : vector<2x32xf32>, vector<32x4xf32>, vector<2x4xf32> -> vector<2x4xf32>
    %c0_14 = arith.constant 0 : index
    %c0_15 = arith.constant 0 : index
    %30 = vector.load %arg5[%c0_14, %c0_15] : memref<1x4xf32, #tpu.memory_space<vmem>>, vector<1x4xf32>
    %31 = vector.broadcast %30 : vector<1x4xf32> to vector<2x4xf32>
    %32 = arith.addf %29, %31 : vector<2x4xf32>
    %cst_16 = arith.constant dense<0xFF800000> : vector<2xf32>
    %33 = vector.multi_reduction <maximumf>, %32, %cst_16 [1] : vector<2x4xf32> to vector<2xf32>
    %34 = vector.shape_cast %33 : vector<2xf32> to vector<2x1xf32>
    %35 = vector.broadcast %34 : vector<2x1xf32> to vector<2x4xf32>
    %36 = arith.subf %32, %35 : vector<2x4xf32>
    %37 = math.exp %36 : vector<2x4xf32>
    %cst_17 = arith.constant dense<0.000000e+00> : vector<2xf32>
    %38 = vector.multi_reduction <add>, %37, %cst_17 [1] : vector<2x4xf32> to vector<2xf32>
    %39 = vector.shape_cast %38 : vector<2xf32> to vector<2x1xf32>
    %40 = vector.broadcast %39 : vector<2x1xf32> to vector<2x4xf32>
    %41 = arith.divf %37, %40 : vector<2x4xf32>
    %c0_18 = arith.constant 0 : index
    %c0_19 = arith.constant 0 : index
    %42 = vector.load %arg7[%c0_18, %c0_19] : memref<2x4xf32, #tpu.memory_space<vmem>>, vector<2x4xf32>
    tpu.vector_store %arg7[%c0_18, %c0_19], %41 {strides = array<i32>} : memref<2x4xf32, #tpu.memory_space<vmem>>, vector<2x4xf32>,
    return
  }
  func.func @transform_0(%arg0: i32) -> (i32, i32, i32) {
    %c0_i32 = arith.constant 0 : i32
    %c0_i32_0 = arith.constant 0 : i32
    %c0_i32_1 = arith.constant 0 : i32
    return %arg0, %c0_i32, %c0_i32_0 : i32, i32, i32
  }
  func.func @transform_1(%arg0: i32) -> (i32, i32) {
    %c0_i32 = arith.constant 0 : i32
    %c0_i32_0 = arith.constant 0 : i32
    %c0_i32_1 = arith.constant 0 : i32
    return %c0_i32, %c0_i32_0 : i32, i32
  }
  func.func @transform_2(%arg0: i32) -> i32 {
    %c0_i32 = arith.constant 0 : i32
    %c0_i32_0 = arith.constant 0 : i32
    return %c0_i32 : i32
  }
  func.func @transform_3(%arg0: i32) -> (i32, i32) {
    %c0_i32 = arith.constant 0 : i32
    %c0_i32_0 = arith.constant 0 : i32
    %c0_i32_1 = arith.constant 0 : i32
    return %c0_i32, %c0_i32_0 : i32, i32
  }
  func.func @transform_4(%arg0: i32) -> (i32, i32) {
    %c0_i32 = arith.constant 0 : i32
    %c0_i32_0 = arith.constant 0 : i32
    %c0_i32_1 = arith.constant 0 : i32
    return %c0_i32, %c0_i32_0 : i32, i32
  }
  func.func @transform_5(%arg0: i32) -> (i32, i32) {
    %c0_i32 = arith.constant 0 : i32
    %c0_i32_0 = arith.constant 0 : i32
    return %arg0, %c0_i32 : i32, i32
  }
  func.func @transform_6(%arg0: i32) -> (i32, i32) {
    %c0_i32 = arith.constant 0 : i32
    %c0_i32_0 = arith.constant 0 : i32
    return %arg0, %c0_i32 : i32, i32
  }
}

</mosaic_0001>

<llo_original>
// kernel: blackbox_predictor_forward.1
$region0: #{blackbox_predictor_forward.1}
  #allocation0 [shape = 'u32[]', space=smem, size = 0x4, offset = 0x4, fixed_abs, tag = 'smem constant byte address 0x4 - core index']
  #allocation1 [shape = 'u32[144,128]{1,0:T(1,128)}', space=vmem, size = 0x12000, scoped, tag = 'internal scratch']
  #allocation2 [shape = 'f32[1]{0:T(128)S(6)}', space=smem, size = 0x200, scoped, tag = 'scoped memory for blackbox_predictor_forward.1']
  %s0 = inlined_call_operand.vmem [shape: f32[2,8,32], index: 0, kind: input, shape index: {}]
  %s1 = inlined_call_operand.vmem [shape: f32[1,32], index: 1, kind: input, shape index: {}]
  %s2 = inlined_call_operand.<no memory space> [shape: f32[1], index: 2, kind: input, shape index: {}]
  %s3 = inlined_call_operand.vmem [shape: f32[32,4], index: 3, kind: input, shape index: {}]
  %s4 = inlined_call_operand.vmem [shape: f32[1,4], index: 4, kind: input, shape index: {}]
  %s5 = inlined_call_operand.vmem [shape: f32[2,8], index: 5, kind: output, shape index: {0}]
  %s6 = inlined_call_operand.hbm [shape: f32[2,4], index: 6, kind: output, shape index: {1}]
  %7 = xla_tuple %s5, %s6
  %s8 = sld [smem:[#allocation0]]
  $region38: #{blackbox_predictor_forward.1} parent=0
    _
  %s10 = ssub.s32 1, %s8
  %s11 = scalar_select 0, %s10, %s8
  %12 = sst [smem:[#allocation2]] %s2
  $region1: #{blackbox_predictor_forward.1} parent=0
    #allocation3 [shape = 'u8[1024]{0}', space=vmem, size = 0x400, scoped, tag = 'output window, operand 1, single buffered']
    #allocation4 [shape = 's32[1]{0}', space=sflag, size = 0x4, scoped, tag = 'scoped memory for blackbox_predictor_forward.1']
    %13 = vsyncpa [#allocation4], 0
    // Predicated region
    $region2: #{blackbox_predictor_forward.1} parent=1 // pred_check
      _
    $region3: #{blackbox_predictor_forward.1} parent=1 // pred_check_branch
      %15 = sbr.rel (0) target = $region5
    $region4: #{blackbox_predictor_forward.1} parent=1 // pred_region
      _
    $region5: #{blackbox_predictor_forward.1} parent=1 // pred_fallthru
      _
    // Predicated region
    $region6: #{blackbox_predictor_forward.1} parent=1 // pred_check
      _
    $region7: #{blackbox_predictor_forward.1} parent=1 // pred_check_branch
      %17 = sbr.rel (0) target = $region9
    $region8: #{blackbox_predictor_forward.1} parent=1 // pred_region
      _
    $region9: #{blackbox_predictor_forward.1} parent=1 // pred_fallthru
      _
    // Predicated region
    $region10: #{blackbox_predictor_forward.1} parent=1 // pred_check
      _
    $region11: #{blackbox_predictor_forward.1} parent=1 // pred_check_branch
      %19 = sbr.rel (0) target = $region13
    $region12: #{blackbox_predictor_forward.1} parent=1 // pred_region
      _
    $region13: #{blackbox_predictor_forward.1} parent=1 // pred_fallthru
      _
    // Predicated region
    $region14: #{blackbox_predictor_forward.1} parent=1 // pred_check
      _
    $region15: #{blackbox_predictor_forward.1} parent=1 // pred_check_branch
      %21 = sbr.rel (0) target = $region17
    $region16: #{blackbox_predictor_forward.1} parent=1 // pred_region
      _
    $region17: #{blackbox_predictor_forward.1} parent=1 // pred_fallthru
      _
    // Predicated region
    $region18: #{blackbox_predictor_forward.1} parent=1 // pred_check
      _
    $region19: #{blackbox_predictor_forward.1} parent=1 // pred_check_branch
      %23 = sbr.rel (0) target = $region21
    $region20: #{blackbox_predictor_forward.1} parent=1 // pred_region
      _
    $region21: #{blackbox_predictor_forward.1} parent=1 // pred_fallthru
      _
    %v24 = vld [vmem:[%s0] sm:$0xff]
    %v25 = vld [vmem:[%s0 + $0x8] sm:$0xff]
    %v26 = vld [vmem:[%s1] sm:$0x1]
    %v28 = vlaneseq
    %v29 = vshrl.u32 %v28, 7
    %v30 = vsub.s32 0, %v29
    %v31 = vrot.slane %v26, %v30
    %v33 = vmul.f32 %v24, %v31
    %v34 = vmul.f32 %v25, %v31
    %vm35 = vcmask 261120
    %v36 = vsel %vm35, %v33, 0.0
    %37 = vadd.xlane.f32.xlu0 %v36
    %v38 = vpop.xlane.xlu0 %37
    %v39 = vsel %vm35, %v34, 0.0
    %40 = vadd.xlane.f32.xlu0 %v39
    %v41 = vpop.xlane.xlu0 %40
    %s42 = sld [smem:[#allocation2]]
    %v43 = vstv %s42
    %v44 = vadd.f32 %v38, %v43
    %v45 = vadd.f32 %v41, %v43
    %v46 = vlaneseq
    %v47 = vand.u32 %v46, 127
    %vm48 = vcmp.eq.s32.totalorder %v47, 0
    %v51 = vlaneseq
    %v52 = vshrl.u32 %v51, 7
    %v53 = vsub.s32 %v47, %v52
    %v54 = vrot.slane %v44, %v53
    %v55 = vlaneseq
    %v56 = vshrl.u32 %v55, 7
    %v57 = vsub.s32 %v47, %v56
    %v58 = vrot.slane %v45, %v57
    %vm59 = vcmask 1041409
    %v60 = vsel %vm59, %v58, %v54
    %v62 = vsel %vm48, -1e+30, %v60
    %vm63 = vcmask 58368
    %v64 = vsel %vm63, %v62, -inf
    %65 = vmax.xlane.f32.xlu0 %v64
    %v66 = vpop.xlane.xlu0 %65
    %v67 = vsub.f32 %v62, %v66
    %v68 = vmul.f32 %v67, 1.442695
    %v69 = vpow.pop %v68
    %v70 = vsel %vm63, %v69, 0.0
    %71 = vadd.xlane.f32.xlu0 %v70
    %v72 = vpop.xlane.xlu0 %71
    %v73 = vrcp.pop %v72
    %v74 = vmul.f32 %v69, %v73
    %75 = vst.msk [vmem:[%s5] sm:$0x3] %vm63, %v74
    %v76 = vlaneseq
    %v77 = vshrl.u32 %v76, 7
    %v78 = vsub.s32 0, %v77
    %v79 = vrot.slane %v74, %v78
    %81 = vbcast.lane.b32.xlu0 %v79, 256
    %v82 = vpop.permute.xlu0 %81
    %v83 = vlaneseq
    %v84 = vshrl.u32 %v83, 7
    %v85 = vsub.s32 1, %v84
    %v86 = vrot.slane %v74, %v85
    %88 = vbcast.lane.b32.xlu0 %v86, 256
    %v89 = vpop.permute.xlu0 %88
    %v90 = vmul.f32 %v24, %v82
    %v91 = vmul.f32 %v25, %v89
    %v92 = vsel %vm35, %v90, 0.0
    %v93 = vrot.slane %v92, 4
    %v94 = vadd.f32 %v92, %v93
    %v95 = vrot.slane %v94, 2
    %v96 = vadd.f32 %v94, %v95
    %v97 = vrot.slane %v96, 1
    %v98 = vadd.f32 %v96, %v97
    %v99 = vsel %vm35, %v91, 0.0
    %v100 = vrot.slane %v99, 4
    %v101 = vadd.f32 %v99, %v100
    %v102 = vrot.slane %v101, 2
    %v103 = vadd.f32 %v101, %v102
    %v104 = vrot.slane %v103, 1
    %v105 = vadd.f32 %v103, %v104
    %v106 = vld [vmem:[%s3] sm:$0xff]
    %v107 = vld [vmem:[%s3 + $0x8] sm:$0xff]
    %v108 = vld [vmem:[%s3 + $0x10] sm:$0xff]
    %v109 = vld [vmem:[%s3 + $0x18] sm:$0xff]
    %v110 = vld [vmem:[%s4] sm:$0x1]
    %v112 = vlaneseq
    %v113 = vshrl.u32 %v112, 7
    %v114 = vsub.s32 0, %v113
    %v115 = vrot.slane %v110, %v114
    %v119 = vsel %vm59, %v105, %v98
    %v120 = vsel %vm35, %v119, 0
    %122 = vmatprep.subr.mxu0 0.0
    %123 = vmatpush1.msra.mxu0 %v106
    %124 = vmatprep.subr.mxu0 0.0
    %125 = vmatpush1.msra.mxu0 %v107
    %126 = vmatprep.subr.mxu0 0.0
    %127 = vmatpush1.msra.mxu0 %v108
    %128 = vmatprep.subr.mxu0 0.0
    %129 = vmatpush1.msra.mxu0 %v109
    %130 = vmatprep.subr.mxu0 0.0
    %131 = vmatpush1.msra.mxu0 0.0
    %132 = vmatprep.subr.mxu0 0.0
    %133 = vmatpush1.msra.mxu0 0.0
    %134 = vmatprep.subr.mxu0 0.0
    %135 = vmatpush1.msra.mxu0 0.0
    %136 = vmatprep.subr.mxu0 0.0
    %137 = vmatpush1.msra.mxu0 0.0
    %138 = vmatprep.subr.mxu0 0.0
    %139 = vmatpush1.msra.mxu0 0.0
    %140 = vmatprep.subr.mxu0 0.0
    %141 = vmatpush1.msra.mxu0 0.0
    %142 = vmatprep.subr.mxu0 0.0
    %143 = vmatpush1.msra.mxu0 0.0
    %144 = vmatprep.subr.mxu0 0.0
    %145 = vmatpush1.msra.mxu0 0.0
    %146 = vmatprep.subr.mxu0 0.0
    %147 = vmatpush1.msra.mxu0 0.0
    %148 = vmatprep.subr.mxu0 0.0
    %149 = vmatpush1.msra.mxu0 0.0
    %150 = vmatprep.subr.mxu0 0.0
    %151 = vmatpush1.msra.mxu0 0.0
    %152 = vmatprep.subr.mxu0 0.0
    %153 = vmatpush1.msra.mxu0 0.0
    %154 = vmatprep.subr.mxu0 0.0
    %155 = vmatpush1.msra.mxu0 0.0
    %156 = vmatprep.subr.mxu0 0.0
    %157 = vmatpush1.msra.mxu0 0.0
    %158 = vmatprep.subr.mxu0 0.0
    %159 = vmatpush1.msra.mxu0 0.0
    %160 = vmatprep.subr.mxu0 0.0
    %161 = vmatpush1.msra.mxu0 0.0
    %162 = vmatprep.subr.mxu0 0.0
    %163 = vmatpush1.msra.mxu0 0.0
    %164 = vmatprep.subr.mxu0 0.0
    %165 = vmatpush1.msra.mxu0 0.0
    %166 = vmatprep.subr.mxu0 0.0
    %167 = vmatpush1.msra.mxu0 0.0
    %168 = vmatprep.subr.mxu0 0.0
    %169 = vmatpush1.msra.mxu0 0.0
    %170 = vmatprep.subr.mxu0 0.0
    %171 = vmatpush1.msra.mxu0 0.0
    %172 = vmatprep.subr.mxu0 0.0
    %173 = vmatpush1.msra.mxu0 0.0
    %174 = vmatprep.subr.mxu0 0.0
    %175 = vmatpush1.msra.mxu0 0.0
    %176 = vmatprep.subr.mxu0 0.0
    %177 = vmatpush1.msra.mxu0 0.0
    %178 = vmatprep.subr.mxu0 0.0
    %179 = vmatpush1.msra.mxu0 0.0
    %180 = vmatprep.subr.mxu0 0.0
    %181 = vmatpush1.msra.mxu0 0.0
    %182 = vmatprep.subr.mxu0 0.0
    %183 = vmatpush1.msra.mxu0 0.0
    %184 = vmatprep.subr.mxu0 0.0
    %185 = vmatpush1.msra.mxu0 0.0
    %186 = vmatprep.mubr.f32.mxu0 0.0
    %187 = vmatmul.mubr.f32.gmra.mrb[0].mxu0 %v120
    %v188 = vpop.f32.mrb[0].mxu0
    %v189 = vadd.f32 %v115, %v188
    %v190 = vpop.f32.mrb[0].mxu0
    %191 = vdwg.mxu0
    %vm192 = vcmask 25600
    %v193 = vsel %vm192, %v189, -inf
    %194 = vmax.xlane.f32.xlu0 %v193
    %v195 = vpop.xlane.xlu0 %194
    %v196 = vsub.f32 %v189, %v195
    %v197 = vmul.f32 %v196, 1.442695
    %v198 = vpow.pop %v197
    %v199 = vsel %vm192, %v198, 0.0
    %200 = vadd.xlane.f32.xlu0 %v199
    %v201 = vpop.xlane.xlu0 %200
    %v202 = vrcp.pop %v201
    %v203 = vmul.f32 %v198, %v202
    %204 = vst.msk [vmem:[#allocation3] sm:$0x3] %vm192, %v203
    // Predicated region
    $region22: #{blackbox_predictor_forward.1} parent=1 // pred_check
      _
    $region23: #{blackbox_predictor_forward.1} parent=1 // pred_check_branch
      %206 = sbr.rel (0) target = $region25
    $region24: #{blackbox_predictor_forward.1} parent=1 // pred_region
      _
    $region25: #{blackbox_predictor_forward.1} parent=1 // pred_fallthru
      _
    // Predicated region
    $region26: #{blackbox_predictor_forward.1} parent=1 // pred_check
      _
    $region27: #{blackbox_predictor_forward.1} parent=1 // pred_check_branch
      %208 = sbr.rel (0) target = $region29
    $region28: #{blackbox_predictor_forward.1} parent=1 // pred_region
      %s210 = ssub.s32 32, 32
      %211 = vsyncadd [#allocation4], %s210
      %s213 = sshll.u32 [#allocation3], 4
      %s214 = int_to_ptr.vmem [resolvable:$true] %s213
      %216 = dma.vmem_to_hbm [thread:$0]  %s214, 32, %s6, [#allocation4]
    $region29: #{blackbox_predictor_forward.1} parent=1 // pred_fallthru
      _
    // Predicated region
    $region30: #{blackbox_predictor_forward.1} parent=1 // pred_check
      _
    $region31: #{blackbox_predictor_forward.1} parent=1 // pred_check_branch
      %218 = sbr.rel (0) target = $region33
    $region32: #{blackbox_predictor_forward.1} parent=1 // pred_region
      _
    $region33: #{blackbox_predictor_forward.1} parent=1 // pred_fallthru
      _
    // Predicated region
    $region34: #{blackbox_predictor_forward.1} parent=1 // pred_check
      _
    $region35: #{blackbox_predictor_forward.1} parent=1 // pred_check_branch
      %220 = sbr.rel (0) target = $region37
    $region36: #{blackbox_predictor_forward.1} parent=1 // pred_region
      %221 = dma.done [#allocation4], 32
    $region37: #{blackbox_predictor_forward.1} parent=1 // pred_fallthru
      _
    %222 = vsyncpa [#allocation4], 1

</llo_original>
